<compile_context>
chip_gen: v5e
topology: v5e:2x2
jax: 0.10.0
libtpu: 0.0.40
codegen_flags: <defaults>
</compile_context>

<pallas_src>
import functools

import jax
import jax.numpy as jnp
from jax.experimental import pallas as pl
from jax.experimental.pallas import tpu as pltpu


def _round_up(x, m):
    return ((x + m - 1) // m) * m


def _mu_sigma_kernel(r_ref, w1_ref, b1_ref, wo_ref, bo_ref, mu_ref, sigma_ref,
                     *, z_dim):
    x = r_ref[...]                                            # (TM, r_dim) f32

    # hidden = relu(x @ W1 + b1)
    h = jnp.dot(x, w1_ref[...], preferred_element_type=jnp.float32)
    h = jnp.maximum(h + b1_ref[...], 0.0)

    # Fused output projection: columns [0, z_dim) = mu, [z_dim, 2*z_dim) = the
    # sigma pre-activation.  One MXU push, then a cheap static lane split.
    y = jnp.dot(h, wo_ref[...], preferred_element_type=jnp.float32)
    y = y + bo_ref[...]

    mu_ref[...] = y[:, :z_dim]                                # pass-through
    sigma_ref[...] = 0.1 + 0.9 * jax.nn.sigmoid(y[:, z_dim:]) # EUP on sigma only


def mu_sigma_encoder(r, params, *, tm_max=2048):
    """r: (batch, few, r_dim) float32 -> (mu, sigma), each (batch, few, z_dim)."""
    w1, b1 = params["w1"], params["b1"]
    wmu, bmu, ws, bs = params["wmu"], params["bmu"], params["ws"], params["bs"]
    batch, few, r_dim = r.shape
    z_dim = wmu.shape[1]
    M = batch * few
    out_cols = 2 * z_dim

    # ---- fuse mu|sigma projection (single concatenate per call) ----
    w_out = jnp.concatenate([wmu, ws], axis=1)        # (r_dim, 2*z_dim)
    b_out = jnp.concatenate([bmu, bs], axis=1)        # (1,    2*z_dim)

    # ---- row tiling: big tiles (<= tm_max rows), multiple of 8, even count ----
    num_tiles = pl.cdiv(M, tm_max)
    if num_tiles > 1 and num_tiles % 2:
        num_tiles += 1                       # even tile count -> v7x dual-TC balance
    TM = _round_up(pl.cdiv(M, num_tiles), 8)
    grid = (pl.cdiv(M, TM),)                 # ragged tail handled by Pallas

    r2d = r.reshape(M, r_dim)                # no jnp.pad: no extra HBM round trip

    cost = pl.CostEstimate(
        flops=2 * M * r_dim * (r_dim + out_cols),
        transcendentals=M * z_dim,
        bytes_accessed=4 * (M * r_dim + r_dim * r_dim + r_dim
                            + r_dim * out_cols + out_cols + 2 * M * z_dim),
    )

    mu2d, sigma2d = pl.pallas_call(
        functools.partial(_mu_sigma_kernel, z_dim=z_dim),
        out_shape=(jax.ShapeDtypeStruct((M, z_dim), jnp.float32),
                   jax.ShapeDtypeStruct((M, z_dim), jnp.float32)),
        grid=grid,
        in_specs=[
            pl.BlockSpec((TM, r_dim), lambda i: (i, 0)),        # activations: tiled
            pl.BlockSpec((r_dim, r_dim), lambda i: (0, 0)),     # W1: resident
            pl.BlockSpec((1, r_dim), lambda i: (0, 0)),         # b1: resident
            pl.BlockSpec((r_dim, out_cols), lambda i: (0, 0)),  # W_out: resident
            pl.BlockSpec((1, out_cols), lambda i: (0, 0)),      # b_out: resident
        ],
        out_specs=(
            pl.BlockSpec((TM, z_dim), lambda i: (i, 0)),        # mu
            pl.BlockSpec((TM, z_dim), lambda i: (i, 0)),        # sigma
        ),
        compiler_params=pltpu.CompilerParams(
            dimension_semantics=("parallel",),   # shards rows across v7x dual TCs
            vmem_limit_bytes=24 * 1024 * 1024,   # explicit budget; ~1 MiB used at TM=2048
        ),
        cost_estimate=cost,
    )(r2d, w1, b1, w_out, b_out)

    mu = mu2d.reshape(batch, few, z_dim)       # contiguous reshape: no copy
    sigma = sigma2d.reshape(batch, few, z_dim)
    return mu, sigma


def init_params(key, r_dim, z_dim):
    """Deterministic init mimicking nn.Linear's U(-1/sqrt(fan_in), 1/sqrt(fan_in)).
    Weights stored as (in_features, out_features)."""
    ks = jax.random.split(key, 6)
    lim = 1.0 / jnp.sqrt(r_dim)
    u = lambda k, shape: jax.random.uniform(k, shape, jnp.float32, -lim, lim)
    return {
        "w1":  u(ks[0], (r_dim, r_dim)),
        "b1":  u(ks[1], (1, r_dim)),
        "wmu": u(ks[2], (r_dim, z_dim)),
        "bmu": u(ks[3], (1, z_dim)),
        "ws":  u(ks[4], (r_dim, z_dim)),
        "bs":  u(ks[5], (1, z_dim)),
    }


def reference(r, params):
    h = jnp.maximum(r @ params["w1"] + params["b1"][0], 0.0)
    mu = h @ params["wmu"] + params["bmu"][0]
    sigma = 0.1 + 0.9 * jax.nn.sigmoid(h @ params["ws"] + params["bs"][0])
    return mu, sigma


if __name__ == "__main__":
    batch, few, r_dim, z_dim = 2, 8, 32, 16

    key = jax.random.PRNGKey(0)
    k_r, k_p = jax.random.split(key)
    r = jax.random.normal(k_r, (batch, few, r_dim), dtype=jnp.float32)
    params = init_params(k_p, r_dim, z_dim)

    mu, sigma = mu_sigma_encoder(r, params)
    jax.block_until_ready((mu, sigma))

    mu_ref, sigma_ref = reference(r, params)
    assert mu.shape == (batch, few, z_dim) and sigma.shape == (batch, few, z_dim)
    assert jnp.allclose(mu, mu_ref, atol=1e-5, rtol=1e-5)
    assert jnp.allclose(sigma, sigma_ref, atol=1e-5, rtol=1e-5)
    assert bool(jnp.all(sigma > 0.1)) and bool(jnp.all(sigma < 1.0))

    # TODO(synk): for large-M deployments on v6e/v7x, cast r and the two outputs
    # to bf16 (f32 accumulation via preferred_element_type, TM rounded to 16) to
    # halve HBM traffic, and sweep pipeline_mode=pl.Buffered(3) on the row-tiled
    # specs on v7x; kept f32 here to preserve the 1e-5 validation tolerance.

    print("KERNEL_OK")
</pallas_src>

<mosaic_0001>
module attributes {stable_mosaic.version = 11 : i64} {
  func.func @_mu_sigma_kernel(%arg0: i32, %arg1: memref<16x32xf32, #tpu.memory_space<vmem>>, %arg2: memref<32x32xf32, #tpu.memory_space<vmem>>, %arg3: memref<1x32xf32, #tpu.memory_space<vmem>>, %arg4: memref<32x32xf32, #tpu.memory_space<vmem>>, %arg5: memref<1x32xf32, #tpu.memory_space<vmem>>, %arg6: memref<16x16xf32, #tpu.memory_space<vmem>>, %arg7: memref<16x16xf32, #tpu.memory_space<vmem>>) attributes {dimension_semantics = [#tpu.dimension_semantics<parallel>], iteration_bounds = array<i64: 1>, scalar_prefetch = 0 : i64, scratch_operands = 0 : i64, tpu.core_type = #tpu.core_type<tc>, window_params = [{transform_indices = @transform_0, window_bounds = array<i64: 16, 32>}, {pipeline_mode = #tpu.pipeline_mode<synchronous>, transform_indices = @transform_1, window_bounds = array<i64: 32, 32>}, {pipeline_mode = #tpu.pipeline_mode<synchronous>, transform_indices = @transform_2, window_bounds = array<i64: 1, 32>}, {pipeline_mode = #tpu.pipeline_mode<synchronous>, transform_indices = @transform_3, window_bounds = array<i64: 32, 32>}, {pipeline_mode = #tpu.pipeline_mode<synchronous>, transform_indices = @transform_4, window_bounds = array<i64: 1, 32>}, {transform_indices = @transform_5, window_bounds = array<i64: 16, 16>}, {transform_indices = @transform_6, window_bounds = array<i64: 16, 16>}]} {
    %c0 = arith.constant 0 : index
    %c0_0 = arith.constant 0 : index
    %0 = vector.load %arg1[%c0, %c0_0] : memref<16x32xf32, #tpu.memory_space<vmem>>, vector<16x32xf32>
    %c0_1 = arith.constant 0 : index
    %c0_2 = arith.constant 0 : index
    %1 = vector.load %arg2[%c0_1, %c0_2] : memref<32x32xf32, #tpu.memory_space<vmem>>, vector<32x32xf32>
    %cst = arith.constant dense<0.000000e+00> : vector<16x32xf32>
    %2 = tpu.matmul %0, %1, %cst {dimension_numbers = #tpu.dot_dimension_numbers<[1], [0], [0], [1], [0, 0, 1, 1], [], []>} : vector<16x32xf32>, vector<32x32xf32>, vector<16x32xf32> -> vector<16x32xf32>
    %c0_3 = arith.constant 0 : index
    %c0_4 = arith.constant 0 : index
    %3 = vector.load %arg3[%c0_3, %c0_4] : memref<1x32xf32, #tpu.memory_space<vmem>>, vector<1x32xf32>
    %4 = vector.broadcast %3 : vector<1x32xf32> to vector<16x32xf32>
    %5 = arith.addf %2, %4 : vector<16x32xf32>
    %cst_5 = arith.constant 0.000000e+00 : f32
    %6 = vector.broadcast %cst_5 : f32 to vector<16x32xf32>
    %7 = arith.maximumf %5, %6 : vector<16x32xf32>
    %c0_6 = arith.constant 0 : index
    %c0_7 = arith.constant 0 : index
    %8 = vector.load %arg4[%c0_6, %c0_7] : memref<32x32xf32, #tpu.memory_space<vmem>>, vector<32x32xf32>
    %cst_8 = arith.constant dense<0.000000e+00> : vector<16x32xf32>
    %9 = tpu.matmul %7, %8, %cst_8 {dimension_numbers = #tpu.dot_dimension_numbers<[1], [0], [0], [1], [0, 0, 1, 1], [], []>} : vector<16x32xf32>, vector<32x32xf32>, vector<16x32xf32> -> vector<16x32xf32>
    %c0_9 = arith.constant 0 : index
    %c0_10 = arith.constant 0 : index
    %10 = vector.load %arg5[%c0_9, %c0_10] : memref<1x32xf32, #tpu.memory_space<vmem>>, vector<1x32xf32>
    %11 = vector.broadcast %10 : vector<1x32xf32> to vector<16x32xf32>
    %12 = arith.addf %9, %11 : vector<16x32xf32>
    %13 = vector.extract_strided_slice %12 {offsets = [0, 0], sizes = [16, 16], strides = [1, 1]} : vector<16x32xf32> to vector<16x16xf32>
    %c0_11 = arith.constant 0 : index
    %c0_12 = arith.constant 0 : index
    %14 = vector.load %arg6[%c0_11, %c0_12] : memref<16x16xf32, #tpu.memory_space<vmem>>, vector<16x16xf32>
    tpu.vector_store %arg6[%c0_11, %c0_12], %13 {strides = array<i32>} : memref<16x16xf32, #tpu.memory_space<vmem>>, vector<16x16xf32>,
    %15 = vector.extract_strided_slice %12 {offsets = [0, 16], sizes = [16, 16], strides = [1, 1]} : vector<16x32xf32> to vector<16x16xf32>
    %16 = arith.negf %15 : vector<16x16xf32>
    %17 = math.exp %16 : vector<16x16xf32>
    %cst_13 = arith.constant 1.000000e+00 : f32
    %18 = vector.broadcast %cst_13 : f32 to vector<16x16xf32>
    %19 = arith.addf %18, %17 : vector<16x16xf32>
    %20 = arith.divf %18, %19 : vector<16x16xf32>
    %cst_14 = arith.constant 0.899999976 : f32
    %21 = vector.broadcast %cst_14 : f32 to vector<16x16xf32>
    %22 = arith.mulf %21, %20 : vector<16x16xf32>
    %cst_15 = arith.constant 1.000000e-01 : f32
    %23 = vector.broadcast %cst_15 : f32 to vector<16x16xf32>
    %24 = arith.addf %23, %22 : vector<16x16xf32>
    %c0_16 = arith.constant 0 : index
    %c0_17 = arith.constant 0 : index
    %25 = vector.load %arg7[%c0_16, %c0_17] : memref<16x16xf32, #tpu.memory_space<vmem>>, vector<16x16xf32>
    tpu.vector_store %arg7[%c0_16, %c0_17], %24 {strides = array<i32>} : memref<16x16xf32, #tpu.memory_space<vmem>>, vector<16x16xf32>,
    return
  }
  func.func @transform_0(%arg0: i32) -> (i32, i32) {
    %c0_i32 = arith.constant 0 : i32
    %c0_i32_0 = arith.constant 0 : i32
    return %arg0, %c0_i32 : i32, i32
  }
  func.func @transform_1(%arg0: i32) -> (i32, i32) {
    %c0_i32 = arith.constant 0 : i32
    %c0_i32_0 = arith.constant 0 : i32
    %c0_i32_1 = arith.constant 0 : i32
    return %c0_i32, %c0_i32_0 : i32, i32
  }
  func.func @transform_2(%arg0: i32) -> (i32, i32) {
    %c0_i32 = arith.constant 0 : i32
    %c0_i32_0 = arith.constant 0 : i32
    %c0_i32_1 = arith.constant 0 : i32
    return %c0_i32, %c0_i32_0 : i32, i32
  }
  func.func @transform_3(%arg0: i32) -> (i32, i32) {
    %c0_i32 = arith.constant 0 : i32
    %c0_i32_0 = arith.constant 0 : i32
    %c0_i32_1 = arith.constant 0 : i32
    return %c0_i32, %c0_i32_0 : i32, i32
  }
  func.func @transform_4(%arg0: i32) -> (i32, i32) {
    %c0_i32 = arith.constant 0 : i32
    %c0_i32_0 = arith.constant 0 : i32
    %c0_i32_1 = arith.constant 0 : i32
    return %c0_i32, %c0_i32_0 : i32, i32
  }
  func.func @transform_5(%arg0: i32) -> (i32, i32) {
    %c0_i32 = arith.constant 0 : i32
    %c0_i32_0 = arith.constant 0 : i32
    return %arg0, %c0_i32 : i32, i32
  }
  func.func @transform_6(%arg0: i32) -> (i32, i32) {
    %c0_i32 = arith.constant 0 : i32
    %c0_i32_0 = arith.constant 0 : i32
    return %arg0, %c0_i32 : i32, i32
  }
}

</mosaic_0001>

<llo_original>
// kernel: tpu_custom_call.1
$region0: #{tpu_custom_call.1}
  #allocation0 [shape = 'u32[]', space=smem, size = 0x4, offset = 0x4, fixed_abs, tag = 'smem constant byte address 0x4 - core index']
  #allocation1 [shape = 'u32[72,128]{1,0:T(1,128)}', space=vmem, size = 0x9000, scoped, tag = 'internal scratch']
  %s0 = inlined_call_operand.hbm [shape: f32[16,32], index: 0, kind: input, shape index: {}]
  %s1 = inlined_call_operand.hbm [shape: f32[32,32], index: 1, kind: input, shape index: {}]
  %s2 = inlined_call_operand.vmem [shape: f32[1,32], index: 2, kind: input, shape index: {}]
  %s3 = inlined_call_operand.hbm [shape: f32[32,32], index: 3, kind: input, shape index: {}]
  %s4 = inlined_call_operand.vmem [shape: f32[1,32], index: 4, kind: input, shape index: {}]
  %s5 = inlined_call_operand.hbm [shape: f32[16,16], index: 5, kind: output, shape index: {0}]
  %s6 = inlined_call_operand.hbm [shape: f32[16,16], index: 6, kind: output, shape index: {1}]
  %7 = xla_tuple %s5, %s6
  %s8 = sld [smem:[#allocation0]]
  $region50: #{tpu_custom_call.1} parent=0
    _
  %s10 = ssub.s32 1, %s8
  %s11 = scalar_select 0, %s10, %s8
  $region1: #{tpu_custom_call.1} parent=0
    #allocation2 [shape = 'u8[8192]{0}', space=vmem, size = 0x2000, scoped, tag = 'input window, operand 0, single buffered']
    #allocation3 [shape = 's32[1]{0}', space=sflag, size = 0x4, scoped, tag = 'scoped memory for tpu_custom_call.1']
    #allocation4 [shape = 's32[1]{0}', space=sflag, size = 0x4, scoped, tag = 'scoped memory for tpu_custom_call.1']
    #allocation5 [shape = 'u8[16384]{0}', space=vmem, size = 0x4000, scoped, tag = 'input window, operand 1, single buffered']
    #allocation6 [shape = 's32[1]{0}', space=sflag, size = 0x4, scoped, tag = 'scoped memory for tpu_custom_call.1']
    #allocation7 [shape = 'u8[16384]{0}', space=vmem, size = 0x4000, scoped, tag = 'input window, operand 3, single buffered']
    #allocation8 [shape = 'u8[8192]{0}', space=vmem, size = 0x2000, scoped, tag = 'output window, operand 0, single buffered']
    #allocation9 [shape = 'u8[8192]{0}', space=vmem, size = 0x2000, scoped, tag = 'output window, operand 1, single buffered']
    #allocation10 [shape = 's32[1]{0}', space=sflag, size = 0x4, scoped, tag = 'scoped memory for tpu_custom_call.1']
    %12 = vsyncpa [#allocation3], 0
    %13 = vsyncpa [#allocation6], 0
    %14 = vsyncpa [#allocation4], 0
    %15 = vsyncpa [#allocation10], 0
    // Predicated region
    $region2: #{tpu_custom_call.1} parent=1 // pred_check
      _
    $region3: #{tpu_custom_call.1} parent=1 // pred_check_branch
      %17 = sbr.rel (0) target = $region5
    $region4: #{tpu_custom_call.1} parent=1 // pred_region
      %19 = vsyncadd [#allocation3], 0
      %s20 = sshll.u32 %s0, 4
      %s21 = int_to_ptr.hbm [resolvable:$true] %s20
      %s22 = sshll.u32 [#allocation2], 4
      %s23 = int_to_ptr.vmem [resolvable:$true] %s22
      %28 = dma.hbm_to_vmem [thread:$0]  %s21, 256, %s23, [#allocation3], 128, 128, 8
    $region5: #{tpu_custom_call.1} parent=1 // pred_fallthru
      _
    // Predicated region
    $region6: #{tpu_custom_call.1} parent=1 // pred_check
      _
    $region7: #{tpu_custom_call.1} parent=1 // pred_check_branch
      %30 = sbr.rel (0) target = $region9
    $region8: #{tpu_custom_call.1} parent=1 // pred_region
      %32 = vsyncadd [#allocation6], 0
      %s33 = sshll.u32 %s1, 4
      %s34 = int_to_ptr.hbm [resolvable:$true] %s33
      %s35 = sshll.u32 [#allocation5], 4
      %s36 = int_to_ptr.vmem [resolvable:$true] %s35
      %41 = dma.hbm_to_vmem [thread:$0]  %s34, 512, %s36, [#allocation6], 128, 128, 8
    $region9: #{tpu_custom_call.1} parent=1 // pred_fallthru
      _
    // Predicated region
    $region10: #{tpu_custom_call.1} parent=1 // pred_check
      _
    $region11: #{tpu_custom_call.1} parent=1 // pred_check_branch
      %43 = sbr.rel (0) target = $region13
    $region12: #{tpu_custom_call.1} parent=1 // pred_region
      _
    $region13: #{tpu_custom_call.1} parent=1 // pred_fallthru
      _
    // Predicated region
    $region14: #{tpu_custom_call.1} parent=1 // pred_check
      _
    $region15: #{tpu_custom_call.1} parent=1 // pred_check_branch
      %45 = sbr.rel (0) target = $region17
    $region16: #{tpu_custom_call.1} parent=1 // pred_region
      %47 = vsyncadd [#allocation6], 0
      %s48 = sshll.u32 %s3, 4
      %s49 = int_to_ptr.hbm [resolvable:$true] %s48
      %s50 = sshll.u32 [#allocation7], 4
      %s51 = int_to_ptr.vmem [resolvable:$true] %s50
      %56 = dma.hbm_to_vmem [thread:$0]  %s49, 512, %s51, [#allocation6], 128, 128, 8
    $region17: #{tpu_custom_call.1} parent=1 // pred_fallthru
      _
    // Predicated region
    $region18: #{tpu_custom_call.1} parent=1 // pred_check
      _
    $region19: #{tpu_custom_call.1} parent=1 // pred_check_branch
      %58 = sbr.rel (0) target = $region21
    $region20: #{tpu_custom_call.1} parent=1 // pred_region
      _
    $region21: #{tpu_custom_call.1} parent=1 // pred_fallthru
      _
    // Predicated region
    $region22: #{tpu_custom_call.1} parent=1 // pred_check
      _
    $region23: #{tpu_custom_call.1} parent=1 // pred_check_branch
      %60 = sbr.rel (0) target = $region25
    $region24: #{tpu_custom_call.1} parent=1 // pred_region
      %62 = dma.done [#allocation3], 256
    $region25: #{tpu_custom_call.1} parent=1 // pred_fallthru
      _
    // Predicated region
    $region26: #{tpu_custom_call.1} parent=1 // pred_check
      _
    $region27: #{tpu_custom_call.1} parent=1 // pred_check_branch
      %64 = sbr.rel (0) target = $region29
    $region28: #{tpu_custom_call.1} parent=1 // pred_region
      %66 = dma.done [#allocation6], 512
    $region29: #{tpu_custom_call.1} parent=1 // pred_fallthru
      _
    // Predicated region
    $region30: #{tpu_custom_call.1} parent=1 // pred_check
      _
    $region31: #{tpu_custom_call.1} parent=1 // pred_check_branch
      %68 = sbr.rel (0) target = $region33
    $region32: #{tpu_custom_call.1} parent=1 // pred_region
      %70 = dma.done [#allocation6], 512
    $region33: #{tpu_custom_call.1} parent=1 // pred_fallthru
      _
    %v71 = vld [vmem:[#allocation2] sm:$0xff]
    %v72 = vld [vmem:[#allocation2 + $0x8] sm:$0xff]
    %v73 = vld [vmem:[#allocation5] sm:$0xff]
    %v74 = vld [vmem:[#allocation5 + $0x8] sm:$0xff]
    %v75 = vld [vmem:[#allocation5 + $0x10] sm:$0xff]
    %v76 = vld [vmem:[#allocation5 + $0x18] sm:$0xff]
    %v77 = vld [vmem:[%s2] sm:$0x1]
    %v79 = vperm.slane %v77, 0
    %vm81 = vcmask 261120
    %v83 = vsel %vm81, %v71, 0
    %v86 = vsel %vm81, %v72, 0
    %88 = vmatpush.msra.mxu0 0.0
    %89 = vmatpush.msra.mxu0 0.0
    %90 = vmatpush.msra.mxu0 0.0
    %91 = vmatpush.msra.mxu0 0.0
    %92 = vmatpush.msra.mxu0 0.0
    %93 = vmatpush.msra.mxu0 0.0
    %94 = vmatpush.msra.mxu0 0.0
    %95 = vmatpush.msra.mxu0 0.0
    %96 = vmatpush.msra.mxu0 0.0
    %97 = vmatpush.msra.mxu0 0.0
    %98 = vmatpush.msra.mxu0 0.0
    %99 = vmatpush.msra.mxu0 0.0
    %100 = vmatpush.msra.mxu0 %v76
    %101 = vmatpush.msra.mxu0 %v75
    %102 = vmatpush.msra.mxu0 %v74
    %103 = vmatpush.msra.mxu0 %v73
    %104 = vmatmul.f32.gmra.mxu0 %v83
    %v105 = vpop.f32.mrf.mxu0
    %v106 = vadd.f32 %v79, %v105
    %107 = vmatmul.f32.gmra.mxu0 %v86
    %v108 = vpop.f32.mrf.mxu0
    %v109 = vadd.f32 %v79, %v108
    %110 = vdwg.mxu0
    %v111 = vmax.f32 %v106, 0.0
    %v112 = vmax.f32 %v109, 0.0
    %v113 = vld [vmem:[#allocation7] sm:$0xff]
    %v114 = vld [vmem:[#allocation7 + $0x8] sm:$0xff]
    %v115 = vld [vmem:[#allocation7 + $0x10] sm:$0xff]
    %v116 = vld [vmem:[#allocation7 + $0x18] sm:$0xff]
    %v117 = vld [vmem:[%s4] sm:$0x1]
    %v119 = vperm.slane %v117, 0
    %v122 = vsel %vm81, %v111, 0
    %v125 = vsel %vm81, %v112, 0
    %127 = vmatpush.msra.mxu0 0.0
    %128 = vmatpush.msra.mxu0 0.0
    %129 = vmatpush.msra.mxu0 0.0
    %130 = vmatpush.msra.mxu0 0.0
    %131 = vmatpush.msra.mxu0 0.0
    %132 = vmatpush.msra.mxu0 0.0
    %133 = vmatpush.msra.mxu0 0.0
    %134 = vmatpush.msra.mxu0 0.0
    %135 = vmatpush.msra.mxu0 0.0
    %136 = vmatpush.msra.mxu0 0.0
    %137 = vmatpush.msra.mxu0 0.0
    %138 = vmatpush.msra.mxu0 0.0
    %139 = vmatpush.msra.mxu0 %v116
    %140 = vmatpush.msra.mxu0 %v115
    %141 = vmatpush.msra.mxu0 %v114
    %142 = vmatpush.msra.mxu0 %v113
    %143 = vmatmul.f32.gmra.mxu0 %v122
    %v144 = vpop.f32.mrf.mxu0
    %v145 = vadd.f32 %v119, %v144
    %146 = vmatmul.f32.gmra.mxu0 %v125
    %v147 = vpop.f32.mrf.mxu0
    %v148 = vadd.f32 %v119, %v147
    %149 = vdwg.mxu0
    %vm150 = vcmask 130048
    %151 = vst.msk [vmem:[#allocation8] sm:$0xff] %vm150, %v145
    %152 = vst.msk [vmem:[#allocation8 + $0x8] sm:$0xff] %vm150, %v148
    %v153 = vxor.u32 %v145, 2147483648
    %v154 = vxor.u32 %v148, 2147483648
    %v155 = vmul.f32 %v153, 1.442695
    %v156 = vpow.pop %v155
    %v157 = vmul.f32 %v154, 1.442695
    %v158 = vpow.pop %v157
    %v159 = vadd.f32 %v156, 1.0
    %v160 = vadd.f32 %v158, 1.0
    %v161 = vrcp.pop %v159
    %v162 = vmul.f32 %v159, %v161
    %v163 = vsub.f32 1.0, %v162
    %v164 = vmul.f32 %v161, %v163
    %v165 = vadd.f32 %v161, %v164
    %vm166 = vweird.f32 %v159
    %vm167 = vweird.f32 %v161
    %vm168 = vmor %vm166, %vm167
    %v169 = vsel %vm168, %v161, %v165
    %v170 = vand.u32 2147483647, %v159
    %vm171 = vcmp.eq.f32.partialorder %v170, 8.507059e+37
    %v172 = vand.u32 %v159, 2147483648
    %v173 = vor.u32 1.1754944e-38, %v172
    %v174 = vsel %vm171, %v173, %v169
    %v175 = vmul.f32 1.0, %v174
    %v176 = vrcp.pop %v160
    %v177 = vmul.f32 %v160, %v176
    %v178 = vsub.f32 1.0, %v177
    %v179 = vmul.f32 %v176, %v178
    %v180 = vadd.f32 %v176, %v179
    %vm181 = vweird.f32 %v160
    %vm182 = vweird.f32 %v176
    %vm183 = vmor %vm181, %vm182
    %v184 = vsel %vm183, %v176, %v180
    %v185 = vand.u32 2147483647, %v160
    %vm186 = vcmp.eq.f32.partialorder %v185, 8.507059e+37
    %v187 = vand.u32 %v160, 2147483648
    %v188 = vor.u32 1.1754944e-38, %v187
    %v189 = vsel %vm186, %v188, %v184
    %v190 = vmul.f32 1.0, %v189
    %v191 = vmul.f32 %v175, 0.9
    %v192 = vmul.f32 %v190, 0.9
    %v193 = vadd.f32 %v191, 0.1
    %v194 = vadd.f32 %v192, 0.1
    %197 = vrot.lane.b32.xlu0 %v193, 112
    %v198 = vpop.permute.xlu0 %197
    %199 = vrot.lane.b32.xlu0 %v194, 112
    %v200 = vpop.permute.xlu0 %199
    %203 = vst.msk [vmem:[#allocation9] sm:$0xff] %vm150, %v198
    %204 = vst.msk [vmem:[#allocation9 + $0x8] sm:$0xff] %vm150, %v200
    // Predicated region
    $region34: #{tpu_custom_call.1} parent=1 // pred_check
      _
    $region35: #{tpu_custom_call.1} parent=1 // pred_check_branch
      %206 = sbr.rel (0) target = $region37
    $region36: #{tpu_custom_call.1} parent=1 // pred_region
      %208 = vsyncadd [#allocation4], 0
      %s209 = sshll.u32 [#allocation8], 4
      %s210 = int_to_ptr.vmem [resolvable:$true] %s209
      %s211 = sshll.u32 %s5, 4
      %s212 = int_to_ptr.hbm [resolvable:$true] %s211
      %217 = dma.vmem_to_hbm [thread:$0]  %s210, 256, %s212, [#allocation4], 128, 128, 8
    $region37: #{tpu_custom_call.1} parent=1 // pred_fallthru
      _
    // Predicated region
    $region38: #{tpu_custom_call.1} parent=1 // pred_check
      _
    $region39: #{tpu_custom_call.1} parent=1 // pred_check_branch
      %219 = sbr.rel (0) target = $region41
    $region40: #{tpu_custom_call.1} parent=1 // pred_region
      %221 = vsyncadd [#allocation10], 0
      %s222 = sshll.u32 [#allocation9], 4
      %s223 = int_to_ptr.vmem [resolvable:$true] %s222
      %s224 = sshll.u32 %s6, 4
      %s225 = int_to_ptr.hbm [resolvable:$true] %s224
      %230 = dma.vmem_to_hbm [thread:$0]  %s223, 256, %s225, [#allocation10], 128, 128, 8
    $region41: #{tpu_custom_call.1} parent=1 // pred_fallthru
      _
    // Predicated region
    $region42: #{tpu_custom_call.1} parent=1 // pred_check
      _
    $region43: #{tpu_custom_call.1} parent=1 // pred_check_branch
      %232 = sbr.rel (0) target = $region45
    $region44: #{tpu_custom_call.1} parent=1 // pred_region
      %234 = dma.done [#allocation4], 256
    $region45: #{tpu_custom_call.1} parent=1 // pred_fallthru
      _
    // Predicated region
    $region46: #{tpu_custom_call.1} parent=1 // pred_check
      _
    $region47: #{tpu_custom_call.1} parent=1 // pred_check_branch
      %236 = sbr.rel (0) target = $region49
    $region48: #{tpu_custom_call.1} parent=1 // pred_region
      %238 = dma.done [#allocation10], 256
    $region49: #{tpu_custom_call.1} parent=1 // pred_fallthru
      _
    %239 = vsyncpa [#allocation3], 1
    %240 = vsyncpa [#allocation6], 1
    %241 = vsyncpa [#allocation4], 1
    %242 = vsyncpa [#allocation10], 1

</llo_original>
